<compile_context>
chip_gen: v7x
topology: tpu7x:2x2x1
jax: 0.10.0
libtpu: 0.0.40
codegen_flags: <defaults>
</compile_context>

<pallas_src>
from functools import partial

import jax
import jax.numpy as jnp
from jax.experimental import pallas as pl
from jax.experimental.pallas import tpu as pltpu

# ----- small, TPU-tile-friendly stand-in shapes for the module defaults -----
L = 8             # tokenized sequence length (clip.tokenize truncated)
D = 128           # style_word_dim (stand-in for 512)
E = 128           # text-feature dim of the encoder output
N_STYLE = 8       # n_style_words (stand-in for 80)
VOCAB = 64        # synthetic tokenizer vocab
PSEUDO_INDEX = 2  # index_to_change (position of the injected pseudo style word)
LN_EPS = 1e-5
_SUBLANE = 8      # f32 sublane count; content-phrase axis padded to this


def _encode_project_kernel(residual_ref, sw_ref, ln_ref, wproj_ref, out_ref,
                           *, seq_len):
    """Fused pseudo-CLIP encode_text hot path for ALL (phrase, style-word) pairs.

    residual_ref : (C1P, D)   f32   per-phrase  sum_t(emb_t) - emb[pseudo_index]
    sw_ref       : (N,   D)   f32   style_words + pos_emb[pseudo_index]
    ln_ref       : (2,   D)   f32   row 0 = gamma, row 1 = beta
    wproj_ref    : (D,   E)   bf16  text projection
    out_ref      : (N*C1P, E) f32   row r = n * C1P + c  (style-word major)
    """
    n, d = sw_ref.shape
    c1p = residual_ref.shape[0]

    # Mean-pooled sequence with the pseudo style word injected at `pseudo_index`:
    # (N,1,D) + (1,C1P,D) broadcast-add; C1P is a sublane multiple so the flatten
    # to (N*C1P, D) is a layout-preserving (free) reshape.
    pooled = (sw_ref[...][:, None, :] + residual_ref[...][None, :, :]) * (1.0 / seq_len)
    x = pooled.reshape(n * c1p, d)                                   # (R, D) f32

    # LayerNorm over D with fused reductions (one pass: sum and sum-of-squares).
    s1 = jnp.sum(x, axis=-1, keepdims=True)
    s2 = jnp.sum(x * x, axis=-1, keepdims=True)
    mu = s1 * (1.0 / d)
    var = jnp.maximum(s2 * (1.0 / d) - mu * mu, 0.0)
    y = (x - mu) * jax.lax.rsqrt(var + LN_EPS) * ln_ref[0:1, :] + ln_ref[1:2, :]

    # One fat (R, D) @ (D, E) projection on the MXU; bf16 operands, f32 accumulate.
    out_ref[...] = jnp.dot(y.astype(jnp.bfloat16), wproj_ref[...],
                           preferred_element_type=jnp.float32)


def pseudo_clip_project(residual_pad, sw_pp, ln_params, w_proj_bf16):
    """(C1P, D), (N, D), (2, D), (D, E)[bf16] -> (N*C1P, E) f32, row = n*C1P + c."""
    c1p, _ = residual_pad.shape
    n = sw_pp.shape[0]
    e = w_proj_bf16.shape[1]
    kern = partial(_encode_project_kernel, seq_len=L)
    # Single invocation (no grid): everything fits in VMEM, no per-step pipeline
    # overhead, one fat matmul.  At production sizes you would tile the N axis
    # into >=2 balanced "parallel" grid steps for v7x's two TensorCores.
    return pl.pallas_call(
        kern,
        out_shape=jax.ShapeDtypeStruct((n * c1p, e), jnp.float32),
        in_specs=[pl.BlockSpec(memory_space=pltpu.MemorySpace.VMEM)] * 4,
        out_specs=pl.BlockSpec(memory_space=pltpu.MemorySpace.VMEM),
    )(residual_pad, sw_pp, ln_params, w_proj_bf16)


# ----------------------------- WordModel glue -------------------------------

def _token_matrix(content_word_ids):
    # synthetic clip.tokenize:
    #   row 0   = "a photo of a"                 [SOT, a, photo, of, a, EOT, pad, pad]
    #   row 1.. = "a photo of a <content_word>"  [SOT, a, photo, of, a, word, EOT, pad]
    rows = [[1, 5, 6, 7, 5, 2, 0, 0]]
    for w in content_word_ids:
        rows.append([1, 5, 6, 7, 5, 10 + int(w), 2, 0])
    return jnp.array(rows, dtype=jnp.int32)                          # (C+1, L)


@partial(jax.jit, static_argnames=("pseudo_index",))
def _word_model_forward(tokens, style_words, tok_emb, pos_emb, ln_params,
                        w_proj_bf16, *, pseudo_index):
    c1 = tokens.shape[0]                                             # C + 1 (static)
    c1p = ((c1 + _SUBLANE - 1) // _SUBLANE) * _SUBLANE

    # Batched token-embedding gather for all phrases at once (single XLA gather).
    emb = jnp.take(tok_emb, tokens, axis=0) + pos_emb[None]          # (C1, L, D)
    # Style-word-independent pooled residual, hoisted out of the kernel.
    residual = jnp.sum(emb, axis=1) - emb[:, pseudo_index, :]        # (C1, D)
    residual_pad = jnp.pad(residual, ((0, c1p - c1), (0, 0)))        # (C1P, D)
    # Fold the positional embedding at the pseudo-word slot into the style words.
    sw_pp = style_words + pos_emb[pseudo_index][None, :]             # (N, D)

    feats = pseudo_clip_project(residual_pad, sw_pp, ln_params, w_proj_bf16)
    feats = feats.reshape(style_words.shape[0], c1p, -1)             # (N, C1P, E) free view
    style_features = feats[:, 0, :]                                  # (N, E)
    style_content_features = feats[:, 1:c1, :]                       # (N, C, E)
    return style_features, style_content_features


class WordModelPallas:
    """JAX/Pallas reimplementation of WordModel's forward pass."""

    def __init__(self, key):
        k_sw, k_tok, k_pos, k_proj = jax.random.split(key, 4)
        # learnable style words: randn * 0.001, shape (n_style_words, style_word_dim)
        self.style_words = jax.random.normal(k_sw, (N_STYLE, D), jnp.float32) * 0.001
        # frozen pseudo-CLIP encoder parameters (deterministic synthetic init)
        self.tok_emb = jax.random.normal(k_tok, (VOCAB, D), jnp.float32) * 0.02
        self.pos_emb = jax.random.normal(k_pos, (L, D), jnp.float32) * 0.01
        # gamma / beta packed into one (2, D) constant.
        self.ln_params = jnp.concatenate(
            [jnp.ones((1, D), jnp.float32), jnp.zeros((1, D), jnp.float32)], axis=0)
        # text projection stored in bf16 (MXU-native on v6e/v7x; f32 accumulation).
        self.w_proj = (jax.random.normal(k_proj, (D, E), jnp.float32)
                       * (D ** -0.5)).astype(jnp.bfloat16)
        self.index = PSEUDO_INDEX

    def forward(self, content_word_ids, style_index):
        del style_index  # only used by the torch NaN-debug branch (omitted)
        tokens = _token_matrix(content_word_ids)
        style_features, style_content_features = _word_model_forward(
            tokens, self.style_words, self.tok_emb, self.pos_emb,
            self.ln_params, self.w_proj, pseudo_index=self.index)
        return [style_features, style_content_features]


if __name__ == "__main__":
    key = jax.random.PRNGKey(0)
    model = WordModelPallas(key)

    content_word_ids = [0, 1, 2, 3]        # 4 synthetic content words
    style_index = 3                        # unused on the non-debug path (as in torch)

    style_feats, style_content_feats = model.forward(content_word_ids, style_index)
    jax.block_until_ready((style_feats, style_content_feats))

    assert style_feats.shape == (N_STYLE, E) and style_feats.dtype == jnp.float32
    assert style_content_feats.shape == (N_STYLE, len(content_word_ids), E)
    assert style_content_feats.dtype == jnp.float32
    assert not bool(jnp.any(jnp.isnan(style_feats)))
    assert not bool(jnp.any(jnp.isnan(style_content_feats)))

    print("KERNEL_OK")
</pallas_src>

<mosaic_0001>
module attributes {stable_mosaic.version = 11 : i64} {
  func.func @_encode_project_kernel(%arg0: memref<8x128xf32, #tpu.memory_space<vmem>>, %arg1: memref<8x128xf32, #tpu.memory_space<vmem>>, %arg2: memref<2x128xf32, #tpu.memory_space<vmem>>, %arg3: memref<128x128xbf16, #tpu.memory_space<vmem>>, %arg4: memref<64x128xf32, #tpu.memory_space<vmem>>) attributes {dimension_semantics = [], scalar_prefetch = 0 : i64, scratch_operands = 0 : i64, tpu.core_type = #tpu.core_type<tc>} {
    %c0 = arith.constant 0 : index
    %c0_0 = arith.constant 0 : index
    %0 = vector.load %arg1[%c0, %c0_0] : memref<8x128xf32, #tpu.memory_space<vmem>>, vector<8x128xf32>
    %1 = vector.shape_cast %0 : vector<8x128xf32> to vector<8x1x128xf32>
    %c0_1 = arith.constant 0 : index
    %c0_2 = arith.constant 0 : index
    %2 = vector.load %arg0[%c0_1, %c0_2] : memref<8x128xf32, #tpu.memory_space<vmem>>, vector<8x128xf32>
    %3 = vector.shape_cast %2 : vector<8x128xf32> to vector<1x8x128xf32>
    %4 = vector.broadcast %1 : vector<8x1x128xf32> to vector<8x8x128xf32>
    %5 = vector.broadcast %3 : vector<1x8x128xf32> to vector<8x8x128xf32>
    %6 = arith.addf %4, %5 : vector<8x8x128xf32>
    %cst = arith.constant 1.250000e-01 : f32
    %7 = vector.broadcast %cst : f32 to vector<8x8x128xf32>
    %8 = arith.mulf %6, %7 : vector<8x8x128xf32>
    %9 = vector.shape_cast %8 : vector<8x8x128xf32> to vector<64x128xf32>
    %cst_3 = arith.constant dense<0.000000e+00> : vector<64xf32>
    %10 = vector.multi_reduction <add>, %9, %cst_3 [1] : vector<64x128xf32> to vector<64xf32>
    %11 = vector.shape_cast %10 : vector<64xf32> to vector<64x1xf32>
    %12 = arith.mulf %9, %9 : vector<64x128xf32>
    %cst_4 = arith.constant dense<0.000000e+00> : vector<64xf32>
    %13 = vector.multi_reduction <add>, %12, %cst_4 [1] : vector<64x128xf32> to vector<64xf32>
    %14 = vector.shape_cast %13 : vector<64xf32> to vector<64x1xf32>
    %cst_5 = arith.constant 7.812500e-03 : f32
    %15 = vector.broadcast %cst_5 : f32 to vector<64x1xf32>
    %16 = arith.mulf %11, %15 : vector<64x1xf32>
    %cst_6 = arith.constant 7.812500e-03 : f32
    %17 = vector.broadcast %cst_6 : f32 to vector<64x1xf32>
    %18 = arith.mulf %14, %17 : vector<64x1xf32>
    %19 = arith.mulf %16, %16 : vector<64x1xf32>
    %20 = arith.subf %18, %19 : vector<64x1xf32>
    %cst_7 = arith.constant 0.000000e+00 : f32
    %21 = vector.broadcast %cst_7 : f32 to vector<64x1xf32>
    %22 = arith.maximumf %20, %21 : vector<64x1xf32>
    %23 = vector.broadcast %16 : vector<64x1xf32> to vector<64x128xf32>
    %24 = arith.subf %9, %23 : vector<64x128xf32>
    %cst_8 = arith.constant 9.99999974E-6 : f32
    %25 = vector.broadcast %cst_8 : f32 to vector<64x1xf32>
    %26 = arith.addf %22, %25 : vector<64x1xf32>
    %27 = math.rsqrt %26 : vector<64x1xf32>
    %28 = vector.broadcast %27 : vector<64x1xf32> to vector<64x128xf32>
    %29 = arith.mulf %24, %28 : vector<64x128xf32>
    %c0_9 = arith.constant 0 : index
    %c0_10 = arith.constant 0 : index
    %30 = vector.load %arg2[%c0_9, %c0_10] : memref<2x128xf32, #tpu.memory_space<vmem>>, vector<1x128xf32>
    %31 = vector.broadcast %30 : vector<1x128xf32> to vector<64x128xf32>
    %32 = arith.mulf %29, %31 : vector<64x128xf32>
    %c1 = arith.constant 1 : index
    %c0_11 = arith.constant 0 : index
    %33 = vector.load %arg2[%c1, %c0_11] : memref<2x128xf32, #tpu.memory_space<vmem>>, vector<1x128xf32>
    %34 = vector.broadcast %33 : vector<1x128xf32> to vector<64x128xf32>
    %35 = arith.addf %32, %34 : vector<64x128xf32>
    %36 = arith.truncf %35 : vector<64x128xf32> to vector<64x128xbf16>
    %c0_12 = arith.constant 0 : index
    %c0_13 = arith.constant 0 : index
    %37 = vector.load %arg3[%c0_12, %c0_13] : memref<128x128xbf16, #tpu.memory_space<vmem>>, vector<128x128xbf16>
    %cst_14 = arith.constant dense<0.000000e+00> : vector<64x128xf32>
    %38 = tpu.matmul %36, %37, %cst_14 {dimension_numbers = #tpu.dot_dimension_numbers<[1], [0], [0], [1], [0, 0, 1, 1], [], []>} : vector<64x128xbf16>, vector<128x128xbf16>, vector<64x128xf32> -> vector<64x128xf32>
    %c0_15 = arith.constant 0 : index
    %c0_16 = arith.constant 0 : index
    %39 = vector.load %arg4[%c0_15, %c0_16] : memref<64x128xf32, #tpu.memory_space<vmem>>, vector<64x128xf32>
    tpu.vector_store %arg4[%c0_15, %c0_16], %38 {strides = array<i32>} : memref<64x128xf32, #tpu.memory_space<vmem>>, vector<64x128xf32>,
    return
  }
}

</mosaic_0001>

<llo_original>
// kernel: _word_model_forward.1
$region0: #{_word_model_forward.1}
  #allocation0 [shape = 'u32[]', space=smem, size = 0x4, offset = 0x4, fixed_abs, tag = 'smem constant byte address 0x4 - core index']
  #allocation1 [shape = 'u32[144,128]{1,0:T(1,128)}', space=vmem, size = 0x12000, scoped, tag = 'internal scratch']
  %s0 = inlined_call_operand.vmem [shape: f32[8,128], index: 0, kind: input, shape index: {}]
  %s1 = inlined_call_operand.vmem [shape: f32[8,128], index: 1, kind: input, shape index: {}]
  %s2 = inlined_call_operand.vmem [shape: f32[2,128], index: 2, kind: input, shape index: {}]
  %s3 = inlined_call_operand.vmem [shape: bf16[128,128], index: 3, kind: input, shape index: {}]
  %s4 = inlined_call_operand.vmem [shape: f32[64,128], index: 4, kind: output, shape index: {}]
  %s5 = sld [smem:[#allocation0]]
  $region26: #{_word_model_forward.1} parent=0
    _
  %s7 = ssub.s32 1, %s5
  %s8 = scalar_select 0, %s7, %s5
  // Predicated region
  $region2: #{_word_model_forward.1} parent=0 // pred_check
    _
  $region3: #{_word_model_forward.1} parent=0 // pred_check_branch
    %10 = sbr.rel (0) target = $region5
  $region4: #{_word_model_forward.1} parent=0 // pred_region
    _
  $region5: #{_word_model_forward.1} parent=0 // pred_fallthru
    _
  // Predicated region
  $region6: #{_word_model_forward.1} parent=0 // pred_check
    _
  $region7: #{_word_model_forward.1} parent=0 // pred_check_branch
    %12 = sbr.rel (0) target = $region9
  $region8: #{_word_model_forward.1} parent=0 // pred_region
    _
  $region9: #{_word_model_forward.1} parent=0 // pred_fallthru
    _
  // Predicated region
  $region10: #{_word_model_forward.1} parent=0 // pred_check
    _
  $region11: #{_word_model_forward.1} parent=0 // pred_check_branch
    %14 = sbr.rel (0) target = $region13
  $region12: #{_word_model_forward.1} parent=0 // pred_region
    _
  $region13: #{_word_model_forward.1} parent=0 // pred_fallthru
    _
  // Predicated region
  $region14: #{_word_model_forward.1} parent=0 // pred_check
    _
  $region15: #{_word_model_forward.1} parent=0 // pred_check_branch
    %16 = sbr.rel (0) target = $region17
  $region16: #{_word_model_forward.1} parent=0 // pred_region
    _
  $region17: #{_word_model_forward.1} parent=0 // pred_fallthru
    _
  %v18 = vld [vmem:[%s1] sm:$0xff]
  %v20 = vcombine.high %v18, %v18
  %v22 = vunpack.c.l.s4 1966171168
  %v23 = vunpack.c.0.s8 %v22
  %v24 = vlaneseq
  %v25 = vshrl.u32 %v24, 7
  %v26 = vsub.s32 %v23, %v25
  %v27 = vrot.slane %v18, %v26
  %v29 = vunpack.c.l.s4 1966171168
  %v30 = vunpack.c.0.s8 %v29
  %v31 = vlaneseq
  %v32 = vshrl.u32 %v31, 7
  %v33 = vsub.s32 %v30, %v32
  %v34 = vrot.slane %v20, %v33
  %v35 = vcombine.high %v27, %v27
  %v36 = vcombine.high %v34, %v34
  %v38 = vunpack.c.l.s4 1966171168
  %v39 = vunpack.c.0.s8 %v38
  %v40 = vlaneseq
  %v41 = vshrl.u32 %v40, 7
  %v42 = vsub.s32 %v39, %v41
  %v43 = vrot.slane %v27, %v42
  %v45 = vunpack.c.l.s4 1966171168
  %v46 = vunpack.c.0.s8 %v45
  %v47 = vlaneseq
  %v48 = vshrl.u32 %v47, 7
  %v49 = vsub.s32 %v46, %v48
  %v50 = vrot.slane %v34, %v49
  %v52 = vunpack.c.l.s4 1966171168
  %v53 = vunpack.c.0.s8 %v52
  %v54 = vlaneseq
  %v55 = vshrl.u32 %v54, 7
  %v56 = vsub.s32 %v53, %v55
  %v57 = vrot.slane %v35, %v56
  %v59 = vunpack.c.l.s4 1966171168
  %v60 = vunpack.c.0.s8 %v59
  %v61 = vlaneseq
  %v62 = vshrl.u32 %v61, 7
  %v63 = vsub.s32 %v60, %v62
  %v64 = vrot.slane %v36, %v63
  %v65 = vcombine.high %v43, %v43
  %v66 = vcombine.high %v50, %v50
  %v67 = vcombine.high %v57, %v57
  %v68 = vcombine.high %v64, %v64
  %v69 = vld [vmem:[%s0] sm:$0xff]
  %v70 = vlaneseq
  %v71 = vshrl.u32 %v70, 7
  %v72 = vsub.s32 0, %v71
  %v73 = vrot.slane %v43, %v72
  %v74 = vlaneseq
  %v75 = vshrl.u32 %v74, 7
  %v76 = vsub.s32 0, %v75
  %v77 = vrot.slane %v57, %v76
  %v78 = vlaneseq
  %v79 = vshrl.u32 %v78, 7
  %v80 = vsub.s32 0, %v79
  %v81 = vrot.slane %v65, %v80
  %v82 = vlaneseq
  %v83 = vshrl.u32 %v82, 7
  %v84 = vsub.s32 0, %v83
  %v85 = vrot.slane %v67, %v84
  %v86 = vlaneseq
  %v87 = vshrl.u32 %v86, 7
  %v88 = vsub.s32 0, %v87
  %v89 = vrot.slane %v50, %v88
  %v90 = vlaneseq
  %v91 = vshrl.u32 %v90, 7
  %v92 = vsub.s32 0, %v91
  %v93 = vrot.slane %v64, %v92
  %v94 = vlaneseq
  %v95 = vshrl.u32 %v94, 7
  %v96 = vsub.s32 0, %v95
  %v97 = vrot.slane %v66, %v96
  %v98 = vlaneseq
  %v99 = vshrl.u32 %v98, 7
  %v100 = vsub.s32 0, %v99
  %v101 = vrot.slane %v68, %v100
  %v110 = vadd.f32 %v73, %v69
  %v111 = vadd.f32 %v77, %v69
  %v112 = vadd.f32 %v81, %v69
  %v113 = vadd.f32 %v85, %v69
  %v114 = vadd.f32 %v89, %v69
  %v115 = vadd.f32 %v93, %v69
  %v116 = vadd.f32 %v97, %v69
  %v117 = vadd.f32 %v101, %v69
  %v118 = vmul.f32 %v110, 0.125
  %v119 = vmul.f32 %v111, 0.125
  %v120 = vmul.f32 %v112, 0.125
  %v121 = vmul.f32 %v113, 0.125
  %v122 = vmul.f32 %v114, 0.125
  %v123 = vmul.f32 %v115, 0.125
  %v124 = vmul.f32 %v116, 0.125
  %v125 = vmul.f32 %v117, 0.125
  %126 = vadd.xlane.f32.xlu0 %v118
  %v127 = vpop.xlane.xlu0 %126
  %128 = vadd.xlane.f32.xlu0 %v119
  %v129 = vpop.xlane.xlu0 %128
  %130 = vadd.xlane.f32.xlu0 %v120
  %v131 = vpop.xlane.xlu0 %130
  %132 = vadd.xlane.f32.xlu0 %v121
  %v133 = vpop.xlane.xlu0 %132
  %134 = vadd.xlane.f32.xlu0 %v122
  %v135 = vpop.xlane.xlu0 %134
  %136 = vadd.xlane.f32.xlu0 %v123
  %v137 = vpop.xlane.xlu0 %136
  %138 = vadd.xlane.f32.xlu0 %v124
  %v139 = vpop.xlane.xlu0 %138
  %140 = vadd.xlane.f32.xlu0 %v125
  %v141 = vpop.xlane.xlu0 %140
  %v142 = vmul.f32 %v118, %v118
  %v143 = vmul.f32 %v119, %v119
  %v144 = vmul.f32 %v120, %v120
  %v145 = vmul.f32 %v121, %v121
  %v146 = vmul.f32 %v122, %v122
  %v147 = vmul.f32 %v123, %v123
  %v148 = vmul.f32 %v124, %v124
  %v149 = vmul.f32 %v125, %v125
  %150 = vadd.xlane.f32.xlu0 %v142
  %v151 = vpop.xlane.xlu0 %150
  %152 = vadd.xlane.f32.xlu0 %v143
  %v153 = vpop.xlane.xlu0 %152
  %154 = vadd.xlane.f32.xlu0 %v144
  %v155 = vpop.xlane.xlu0 %154
  %156 = vadd.xlane.f32.xlu0 %v145
  %v157 = vpop.xlane.xlu0 %156
  %158 = vadd.xlane.f32.xlu0 %v146
  %v159 = vpop.xlane.xlu0 %158
  %160 = vadd.xlane.f32.xlu0 %v147
  %v161 = vpop.xlane.xlu0 %160
  %162 = vadd.xlane.f32.xlu0 %v148
  %v163 = vpop.xlane.xlu0 %162
  %164 = vadd.xlane.f32.xlu0 %v149
  %v165 = vpop.xlane.xlu0 %164
  %v166 = vmul.f32 %v127, 0.0078125
  %v167 = vmul.f32 %v129, 0.0078125
  %v168 = vmul.f32 %v131, 0.0078125
  %v169 = vmul.f32 %v133, 0.0078125
  %v170 = vmul.f32 %v135, 0.0078125
  %v171 = vmul.f32 %v137, 0.0078125
  %v172 = vmul.f32 %v139, 0.0078125
  %v173 = vmul.f32 %v141, 0.0078125
  %v174 = vmul.f32 %v151, 0.0078125
  %v175 = vmul.f32 %v153, 0.0078125
  %v176 = vmul.f32 %v155, 0.0078125
  %v177 = vmul.f32 %v157, 0.0078125
  %v178 = vmul.f32 %v159, 0.0078125
  %v179 = vmul.f32 %v161, 0.0078125
  %v180 = vmul.f32 %v163, 0.0078125
  %v181 = vmul.f32 %v165, 0.0078125
  %v182 = vmul.f32 %v166, %v166
  %v183 = vmul.f32 %v167, %v167
  %v184 = vmul.f32 %v168, %v168
  %v185 = vmul.f32 %v169, %v169
  %v186 = vmul.f32 %v170, %v170
  %v187 = vmul.f32 %v171, %v171
  %v188 = vmul.f32 %v172, %v172
  %v189 = vmul.f32 %v173, %v173
  %v190 = vsub.f32 %v174, %v182
  %v191 = vsub.f32 %v175, %v183
  %v192 = vsub.f32 %v176, %v184
  %v193 = vsub.f32 %v177, %v185
  %v194 = vsub.f32 %v178, %v186
  %v195 = vsub.f32 %v179, %v187
  %v196 = vsub.f32 %v180, %v188
  %v197 = vsub.f32 %v181, %v189
  %v198 = vmax.f32 %v190, 0.0
  %v199 = vmax.f32 %v191, 0.0
  %v200 = vmax.f32 %v192, 0.0
  %v201 = vmax.f32 %v193, 0.0
  %v202 = vmax.f32 %v194, 0.0
  %v203 = vmax.f32 %v195, 0.0
  %v204 = vmax.f32 %v196, 0.0
  %v205 = vmax.f32 %v197, 0.0
  %v206 = vsub.f32 %v118, %v166
  %v207 = vsub.f32 %v119, %v167
  %v208 = vsub.f32 %v120, %v168
  %v209 = vsub.f32 %v121, %v169
  %v210 = vsub.f32 %v122, %v170
  %v211 = vsub.f32 %v123, %v171
  %v212 = vsub.f32 %v124, %v172
  %v213 = vsub.f32 %v125, %v173
  %v214 = vadd.f32 %v198, 1e-05
  %v215 = vadd.f32 %v199, 1e-05
  %v216 = vadd.f32 %v200, 1e-05
  %v217 = vadd.f32 %v201, 1e-05
  %v218 = vadd.f32 %v202, 1e-05
  %v219 = vadd.f32 %v203, 1e-05
  %v220 = vadd.f32 %v204, 1e-05
  %v221 = vadd.f32 %v205, 1e-05
  %v222 = vrsqrt.pop %v214
  %v223 = vrsqrt.pop %v215
  %v224 = vrsqrt.pop %v216
  %v225 = vrsqrt.pop %v217
  %v226 = vrsqrt.pop %v218
  %v227 = vrsqrt.pop %v219
  %v228 = vrsqrt.pop %v220
  %v229 = vrsqrt.pop %v221
  %v230 = vmul.f32 %v206, %v222
  %v231 = vmul.f32 %v207, %v223
  %v232 = vmul.f32 %v208, %v224
  %v233 = vmul.f32 %v209, %v225
  %v234 = vmul.f32 %v210, %v226
  %v235 = vmul.f32 %v211, %v227
  %v236 = vmul.f32 %v212, %v228
  %v237 = vmul.f32 %v213, %v229
  %v238 = vld [vmem:[%s2] sm:$0x1]
  %v239 = vlaneseq
  %v240 = vshrl.u32 %v239, 7
  %v241 = vsub.s32 0, %v240
  %v242 = vrot.slane %v238, %v241
  %v243 = vmul.f32 %v230, %v242
  %v244 = vmul.f32 %v231, %v242
  %v245 = vmul.f32 %v232, %v242
  %v246 = vmul.f32 %v233, %v242
  %v247 = vmul.f32 %v234, %v242
  %v248 = vmul.f32 %v235, %v242
  %v249 = vmul.f32 %v236, %v242
  %v250 = vmul.f32 %v237, %v242
  %v251 = vld [vmem:[%s2 + $0x1] sm:$0x1]
  %v252 = vlaneseq
  %v253 = vshrl.u32 %v252, 7
  %v254 = vsub.s32 0, %v253
  %v255 = vrot.slane %v251, %v254
  %v256 = vadd.f32 %v243, %v255
  %v257 = vadd.f32 %v244, %v255
  %v258 = vadd.f32 %v245, %v255
  %v259 = vadd.f32 %v246, %v255
  %v260 = vadd.f32 %v247, %v255
  %v261 = vadd.f32 %v248, %v255
  %v262 = vadd.f32 %v249, %v255
  %v263 = vadd.f32 %v250, %v255
  %v264 = vpack.c.bf16 %v257, %v256
  %v265 = vpack.c.bf16 %v259, %v258
  %v266 = vpack.c.bf16 %v261, %v260
  %v267 = vpack.c.bf16 %v263, %v262
  %v268 = vld [vmem:[%s3] sm:$0xf]
  %v269 = vld [vmem:[%s3 + $0x4] sm:$0xf]
  %v270 = vld [vmem:[%s3 + $0x8] sm:$0xf]
  %v271 = vld [vmem:[%s3 + $0xc] sm:$0xf]
  %v272 = vld [vmem:[%s3 + $0x10] sm:$0xf]
  %v273 = vld [vmem:[%s3 + $0x14] sm:$0xf]
  %v274 = vld [vmem:[%s3 + $0x18] sm:$0xf]
  %v275 = vld [vmem:[%s3 + $0x1c] sm:$0xf]
  %v276 = vld [vmem:[%s3 + $0x20] sm:$0xf]
  %v277 = vld [vmem:[%s3 + $0x24] sm:$0xf]
  %v278 = vld [vmem:[%s3 + $0x28] sm:$0xf]
  %v279 = vld [vmem:[%s3 + $0x2c] sm:$0xf]
  %v280 = vld [vmem:[%s3 + $0x30] sm:$0xf]
  %v281 = vld [vmem:[%s3 + $0x34] sm:$0xf]
  %v282 = vld [vmem:[%s3 + $0x38] sm:$0xf]
  %v283 = vld [vmem:[%s3 + $0x3c] sm:$0xf]
  %v300 = vunpack.c.l.b16 %v268
  %v301 = vunpack.c.l.b16 %v269
  %v302 = vunpack.c.l.b16 %v270
  %v303 = vunpack.c.l.b16 %v271
  %v304 = vunpack.c.l.b16 %v272
  %v305 = vunpack.c.l.b16 %v273
  %v306 = vunpack.c.l.b16 %v274
  %v307 = vunpack.c.l.b16 %v275
  %v308 = vunpack.c.l.b16 %v276
  %v309 = vunpack.c.l.b16 %v277
  %v310 = vunpack.c.l.b16 %v278
  %v311 = vunpack.c.l.b16 %v279
  %v312 = vunpack.c.l.b16 %v280
  %v313 = vunpack.c.l.b16 %v281
  %v314 = vunpack.c.l.b16 %v282
  %v315 = vunpack.c.l.b16 %v283
  %v316 = vpack.c.b16 %v301, %v300
  %v317 = vpack.c.b16 %v303, %v302
  %v318 = vpack.c.b16 %v305, %v304
  %v319 = vpack.c.b16 %v307, %v306
  %v320 = vpack.c.b16 %v309, %v308
  %v321 = vpack.c.b16 %v311, %v310
  %v322 = vpack.c.b16 %v313, %v312
  %v323 = vpack.c.b16 %v315, %v314
  %332 = vmatprep.subr.bf16.mxu0 0
  %333 = vmatpush1.bf16.msra.mxu0 %v316
  %334 = vmatprep.subr.bf16.mxu0 0
  %335 = vmatpush1.bf16.msra.mxu0 %v317
  %336 = vmatprep.subr.bf16.mxu0 0
  %337 = vmatpush1.bf16.msra.mxu0 %v318
  %338 = vmatprep.subr.bf16.mxu0 0
  %339 = vmatpush1.bf16.msra.mxu0 %v319
  %340 = vmatprep.subr.bf16.mxu0 0
  %341 = vmatpush1.bf16.msra.mxu0 %v320
  %342 = vmatprep.subr.bf16.mxu0 0
  %343 = vmatpush1.bf16.msra.mxu0 %v321
  %344 = vmatprep.subr.bf16.mxu0 0
  %345 = vmatpush1.bf16.msra.mxu0 %v322
  %346 = vmatprep.subr.bf16.mxu0 0
  %347 = vmatpush1.bf16.msra.mxu0 %v323
  %348 = vmatprep.subr.bf16.mxu0 0
  %349 = vmatpush1.bf16.msra.mxu0 0
  %350 = vmatprep.subr.bf16.mxu0 0
  %351 = vmatpush1.bf16.msra.mxu0 0
  %352 = vmatprep.subr.bf16.mxu0 0
  %353 = vmatpush1.bf16.msra.mxu0 0
  %354 = vmatprep.subr.bf16.mxu0 0
  %355 = vmatpush1.bf16.msra.mxu0 0
  %356 = vmatprep.subr.bf16.mxu0 0
  %357 = vmatpush1.bf16.msra.mxu0 0
  %358 = vmatprep.subr.bf16.mxu0 0
  %359 = vmatpush1.bf16.msra.mxu0 0
  %360 = vmatprep.subr.bf16.mxu0 0
  %361 = vmatpush1.bf16.msra.mxu0 0
  %362 = vmatprep.subr.bf16.mxu0 0
  %363 = vmatpush1.bf16.msra.mxu0 0
  %364 = vmatprep.mubr.bf16.mxu0 0
  %365 = vmatmul.mubr.bf16.gmra.mrb[0].mxu0 %v264
  %v366 = vpop.f32.mrb[0].mxu0
  %v367 = vadd.f32 0.0, %v366
  %v368 = vpop.f32.mrb[0].mxu0
  %v369 = vpop.f32.mrb[0].mxu0
  %v370 = vadd.f32 0.0, %v369
  %v371 = vpop.f32.mrb[0].mxu0
  %372 = vmatprep.mubr.bf16.mxu0 0
  %373 = vmatmul.mubr.bf16.gmra.mrb[0].mxu0 %v265
  %v374 = vpop.f32.mrb[0].mxu0
  %v375 = vadd.f32 0.0, %v374
  %v376 = vpop.f32.mrb[0].mxu0
  %v377 = vpop.f32.mrb[0].mxu0
  %v378 = vadd.f32 0.0, %v377
  %v379 = vpop.f32.mrb[0].mxu0
  %380 = vmatprep.mubr.bf16.mxu0 0
  %381 = vmatmul.mubr.bf16.gmra.mrb[0].mxu0 %v266
  %v382 = vpop.f32.mrb[0].mxu0
  %v383 = vadd.f32 0.0, %v382
  %v384 = vpop.f32.mrb[0].mxu0
  %v385 = vpop.f32.mrb[0].mxu0
  %v386 = vadd.f32 0.0, %v385
  %v387 = vpop.f32.mrb[0].mxu0
  %388 = vmatprep.mubr.bf16.mxu0 0
  %389 = vmatmul.mubr.bf16.gmra.mrb[0].mxu0 %v267
  %v390 = vpop.f32.mrb[0].mxu0
  %v391 = vadd.f32 0.0, %v390
  %v392 = vpop.f32.mrb[0].mxu0
  %v393 = vpop.f32.mrb[0].mxu0
  %v394 = vadd.f32 0.0, %v393
  %v395 = vpop.f32.mrb[0].mxu0
  %396 = vdwg.mxu0
  %397 = vst [vmem:[%s4] sm:$0xff] %v367
  %398 = vst [vmem:[%s4 + $0x8] sm:$0xff] %v370
  %399 = vst [vmem:[%s4 + $0x10] sm:$0xff] %v375
  %400 = vst [vmem:[%s4 + $0x18] sm:$0xff] %v378
  %401 = vst [vmem:[%s4 + $0x20] sm:$0xff] %v383
  %402 = vst [vmem:[%s4 + $0x28] sm:$0xff] %v386
  %403 = vst [vmem:[%s4 + $0x30] sm:$0xff] %v391
  %404 = vst [vmem:[%s4 + $0x38] sm:$0xff] %v394
  // Predicated region
  $region18: #{_word_model_forward.1} parent=0 // pred_check
    _
  $region19: #{_word_model_forward.1} parent=0 // pred_check_branch
    %406 = sbr.rel (0) target = $region21
  $region20: #{_word_model_forward.1} parent=0 // pred_region
    _
  $region21: #{_word_model_forward.1} parent=0 // pred_fallthru
    _
  // Predicated region
  $region22: #{_word_model_forward.1} parent=0 // pred_check
    _
  $region23: #{_word_model_forward.1} parent=0 // pred_check_branch
    %408 = sbr.rel (0) target = $region25
  $region24: #{_word_model_forward.1} parent=0 // pred_region
    _
  $region25: #{_word_model_forward.1} parent=0 // pred_fallthru
    _

</llo_original>
